<compile_context>
chip_gen: v5e
topology: v5e:2x2
jax: 0.10.0
libtpu: 0.0.40
codegen_flags: <defaults>
</compile_context>

<pallas_src>
import jax
import jax.numpy as jnp
from jax.experimental import pallas as pl
from jax.experimental.pallas import tpu as pltpu


def _round_up(n, m):
    return ((n + m - 1) // m) * m


def _pad2(a, rows, cols):
    r, c = a.shape
    if r == rows and c == cols:
        return a
    return jnp.pad(a, ((0, rows - r), (0, cols - c)))


def mlp_kernel(x_ref, w1_ref, b1_ref, w2_ref, b2_ref, o_ref, acc_ref):
    """One (batch-tile, k-tile) step of sigmoid(relu(x@W1 + b1) @ W2 + b2)."""
    k = pl.program_id(1)

    @pl.when(k == 0)
    def _init():
        acc_ref[...] = jnp.zeros_like(acc_ref)

    # Partial first matmul over this K slice (MXU, f32 accumulate).
    acc_ref[...] += jnp.dot(
        x_ref[...], w1_ref[...], preferred_element_type=jnp.float32
    )

    @pl.when(k == pl.num_programs(1) - 1)
    def _finalize():
        # Bias + ReLU in f32 (safe on v5e which has no bf16 VPU/EUP).
        h = jnp.maximum(acc_ref[...] + b1_ref[...], 0.0)
        y = jnp.dot(
            h.astype(w2_ref.dtype), w2_ref[...],
            preferred_element_type=jnp.float32,
        ) + b2_ref[...]
        # sigmoid(y) = 1 / (1 + exp(-y)); exp and the approximate reciprocal
        # both execute on the EUP slot instead of a VPU divide.
        o_ref[...] = pl.reciprocal(1.0 + jnp.exp(-y), approx=True).astype(o_ref.dtype)


def mlp_forward(x, w1, b1, w2, b2, *, tb=256, tk=512, compute_dtype=None):
    """Fused two-layer MLP (Linear->ReLU->Linear->Sigmoid) as a Pallas kernel.

    x:  [B, D_in], w1: [D_in, D_h], b1: [1, D_h] (or [D_h]),
    w2: [D_h, D_out], b2: [1, D_out] (or [D_out]).  Returns [B, D_out].
    compute_dtype=jnp.bfloat16 casts x/W1/W2 for the MXU (f32 accumulate) on
    v6e / v7x; leave None for full f32.
    """
    B, D_in = x.shape
    D_h = w1.shape[-1]
    D_out = w2.shape[-1]
    out_dtype = x.dtype

    if compute_dtype is not None:
        x = x.astype(compute_dtype)
        w1 = w1.astype(compute_dtype)
        w2 = w2.astype(compute_dtype)
    b1 = b1.astype(jnp.float32)
    b2 = b2.astype(jnp.float32)

    # Tile sizes: batch tile = multiple of 8 sublanes, K tile = multiple of 128 lanes.
    tb = max(8, _round_up(min(tb, _round_up(B, 8)), 8))
    tk = max(128, _round_up(min(tk, _round_up(D_in, 128)), 128))

    Bp = _round_up(B, tb)        # padded (ragged-safe) batch
    Kp = _round_up(D_in, tk)     # padded reduction dim
    Hp = _round_up(D_h, 128)     # lane-dense hidden dim
    Np = _round_up(D_out, 128)   # lane-dense output dim (unmasked stores)

    xp = _pad2(x, Bp, Kp)
    w1p = _pad2(w1, Kp, Hp)
    b1p = _pad2(b1.reshape(1, D_h), 1, Hp)
    w2p = _pad2(w2, Hp, Np)
    b2p = _pad2(b2.reshape(1, D_out), 1, Np)

    grid = (Bp // tb, Kp // tk)

    out_p = pl.pallas_call(
        mlp_kernel,
        out_shape=jax.ShapeDtypeStruct((Bp, Np), out_dtype),
        grid_spec=pltpu.PrefetchScalarGridSpec(
            num_scalar_prefetch=0,
            grid=grid,
            in_specs=[
                pl.BlockSpec((tb, tk), lambda i, k: (i, k)),   # x    (batch, K) tile
                pl.BlockSpec((tk, Hp), lambda i, k: (k, 0)),   # W1   (K, H) tile
                pl.BlockSpec((1, Hp), lambda i, k: (0, 0)),    # b1   grid-invariant
                pl.BlockSpec((Hp, Np), lambda i, k: (0, 0)),   # W2   grid-invariant
                pl.BlockSpec((1, Np), lambda i, k: (0, 0)),    # b2   grid-invariant
            ],
            out_specs=pl.BlockSpec((tb, Np), lambda i, k: (i, 0)),
            scratch_shapes=[pltpu.VMEM((tb, Hp), jnp.float32)],  # f32 accumulator
        ),
        compiler_params=pltpu.CompilerParams(
            # batch axis parallel (megacore on v7x), reduction axis arbitrary.
            dimension_semantics=("parallel", "arbitrary"),
            vmem_limit_bytes=32 * 1024 * 1024,
        ),
    )(xp, w1p, b1p, w2p, b2p)

    # Slice off batch / lane padding outside the kernel.
    return out_p[:B, :D_out]


def _reference(x, w1, b1, w2, b2):
    h = jnp.maximum(x @ w1 + b1, 0.0)
    return jax.nn.sigmoid(h @ w2 + b2)


if __name__ == "__main__":
    # nn_net = [100*100*3, 100*100, 22] scaled down by 100x: 300 -> 100 -> 22.
    # Ragged batch (500) exercises batch padding; tb=256 -> 2 parallel batch
    # tiles; tk=128 -> 3 K-reduction steps (D_in=300 padded to 384).
    B, D_in, D_h, D_out = 500, 300, 100, 22

    key = jax.random.PRNGKey(0)
    kx, k1, kb1, k2, kb2 = jax.random.split(key, 5)

    x = jax.random.normal(kx, (B, D_in), dtype=jnp.float32)

    # Deterministic Linear-style init: U(-1/sqrt(fan_in), 1/sqrt(fan_in))
    lim1 = 1.0 / (D_in ** 0.5)
    w1 = jax.random.uniform(k1, (D_in, D_h), jnp.float32, -lim1, lim1)
    b1 = jax.random.uniform(kb1, (1, D_h), jnp.float32, -lim1, lim1)
    lim2 = 1.0 / (D_h ** 0.5)
    w2 = jax.random.uniform(k2, (D_h, D_out), jnp.float32, -lim2, lim2)
    b2 = jax.random.uniform(kb2, (1, D_out), jnp.float32, -lim2, lim2)

    ref = _reference(x, w1, b1, w2, b2)

    # f32 path.
    out = mlp_forward(x, w1, b1, w2, b2, tb=256, tk=128)
    out = jax.block_until_ready(out)
    assert out.shape == (B, D_out)
    assert jnp.allclose(out, ref, atol=2e-3, rtol=2e-3), float(
        jnp.max(jnp.abs(out - ref)))

    # bf16-weights path (v6e/v7x fast path): bf16 MXU inputs, f32 accumulate.
    out_bf16 = mlp_forward(x, w1, b1, w2, b2, tb=256, tk=128,
                           compute_dtype=jnp.bfloat16)
    out_bf16 = jax.block_until_ready(out_bf16)
    assert out_bf16.shape == (B, D_out)
    assert jnp.allclose(out_bf16, ref, atol=5e-2, rtol=5e-2), float(
        jnp.max(jnp.abs(out_bf16 - ref)))

    print("KERNEL_OK")
</pallas_src>

<mosaic_0001>
module attributes {stable_mosaic.version = 11 : i64} {
  func.func @mlp_kernel(%arg0: i32, %arg1: i32, %arg2: memref<256x128xf32, #tpu.memory_space<vmem>>, %arg3: memref<128x128xf32, #tpu.memory_space<vmem>>, %arg4: memref<1x128xf32, #tpu.memory_space<vmem>>, %arg5: memref<128x128xf32, #tpu.memory_space<vmem>>, %arg6: memref<1x128xf32, #tpu.memory_space<vmem>>, %arg7: memref<256x128xf32, #tpu.memory_space<vmem>>, %arg8: memref<256x128xf32, #tpu.memory_space<vmem>>) attributes {dimension_semantics = [#tpu.dimension_semantics<parallel>, #tpu.dimension_semantics<arbitrary>], iteration_bounds = array<i64: 2, 3>, scalar_prefetch = 0 : i64, scratch_operands = 1 : i64, tpu.core_type = #tpu.core_type<tc>, window_params = [{transform_indices = @transform_0, window_bounds = array<i64: 256, 128>}, {transform_indices = @transform_1, window_bounds = array<i64: 128, 128>}, {pipeline_mode = #tpu.pipeline_mode<synchronous>, transform_indices = @transform_2, window_bounds = array<i64: 1, 128>}, {pipeline_mode = #tpu.pipeline_mode<synchronous>, transform_indices = @transform_3, window_bounds = array<i64: 128, 128>}, {pipeline_mode = #tpu.pipeline_mode<synchronous>, transform_indices = @transform_4, window_bounds = array<i64: 1, 128>}, {transform_indices = @transform_5, window_bounds = array<i64: 256, 128>}]} {
    %c0_i32 = arith.constant 0 : i32
    %0 = arith.cmpi eq, %arg1, %c0_i32 : i32
    %1 = arith.extui %0 : i1 to i32
    %c0_i32_0 = arith.constant 0 : i32
    %2 = arith.cmpi ne, %1, %c0_i32_0 : i32
    scf.if %2 {
      %cst_9 = arith.constant 0.000000e+00 : f32
      %12 = vector.broadcast %cst_9 : f32 to vector<256x128xf32>
      %c0_10 = arith.constant 0 : index
      %c0_11 = arith.constant 0 : index
      %13 = vector.load %arg8[%c0_10, %c0_11] : memref<256x128xf32, #tpu.memory_space<vmem>>, vector<256x128xf32>
      tpu.vector_store %arg8[%c0_10, %c0_11], %12 {strides = array<i32>} : memref<256x128xf32, #tpu.memory_space<vmem>>, vector<256x128xf32>,
    } else {
    }
    %c0 = arith.constant 0 : index
    %c0_1 = arith.constant 0 : index
    %3 = vector.load %arg8[%c0, %c0_1] : memref<256x128xf32, #tpu.memory_space<vmem>>, vector<256x128xf32>
    %c0_2 = arith.constant 0 : index
    %c0_3 = arith.constant 0 : index
    %4 = vector.load %arg2[%c0_2, %c0_3] : memref<256x128xf32, #tpu.memory_space<vmem>>, vector<256x128xf32>
    %c0_4 = arith.constant 0 : index
    %c0_5 = arith.constant 0 : index
    %5 = vector.load %arg3[%c0_4, %c0_5] : memref<128x128xf32, #tpu.memory_space<vmem>>, vector<128x128xf32>
    %cst = arith.constant dense<0.000000e+00> : vector<256x128xf32>
    %6 = tpu.matmul %4, %5, %cst {dimension_numbers = #tpu.dot_dimension_numbers<[1], [0], [0], [1], [0, 0, 1, 1], [], []>} : vector<256x128xf32>, vector<128x128xf32>, vector<256x128xf32> -> vector<256x128xf32>
    %7 = arith.addf %3, %6 : vector<256x128xf32>
    %c0_6 = arith.constant 0 : index
    %c0_7 = arith.constant 0 : index
    %8 = vector.load %arg8[%c0_6, %c0_7] : memref<256x128xf32, #tpu.memory_space<vmem>>, vector<256x128xf32>
    tpu.vector_store %arg8[%c0_6, %c0_7], %7 {strides = array<i32>} : memref<256x128xf32, #tpu.memory_space<vmem>>, vector<256x128xf32>,
    %c2_i32 = arith.constant 2 : i32
    %9 = arith.cmpi eq, %arg1, %c2_i32 : i32
    %10 = arith.extui %9 : i1 to i32
    %c0_i32_8 = arith.constant 0 : i32
    %11 = arith.cmpi ne, %10, %c0_i32_8 : i32
    scf.if %11 {
      %c0_9 = arith.constant 0 : index
      %c0_10 = arith.constant 0 : index
      %12 = vector.load %arg8[%c0_9, %c0_10] : memref<256x128xf32, #tpu.memory_space<vmem>>, vector<256x128xf32>
      %c0_11 = arith.constant 0 : index
      %c0_12 = arith.constant 0 : index
      %13 = vector.load %arg4[%c0_11, %c0_12] : memref<1x128xf32, #tpu.memory_space<vmem>>, vector<1x128xf32>
      %14 = vector.broadcast %13 : vector<1x128xf32> to vector<256x128xf32>
      %15 = arith.addf %12, %14 : vector<256x128xf32>
      %cst_13 = arith.constant 0.000000e+00 : f32
      %16 = vector.broadcast %cst_13 : f32 to vector<256x128xf32>
      %17 = arith.maximumf %15, %16 : vector<256x128xf32>
      %c0_14 = arith.constant 0 : index
      %c0_15 = arith.constant 0 : index
      %18 = vector.load %arg5[%c0_14, %c0_15] : memref<128x128xf32, #tpu.memory_space<vmem>>, vector<128x128xf32>
      %cst_16 = arith.constant dense<0.000000e+00> : vector<256x128xf32>
      %19 = tpu.matmul %17, %18, %cst_16 {dimension_numbers = #tpu.dot_dimension_numbers<[1], [0], [0], [1], [0, 0, 1, 1], [], []>} : vector<256x128xf32>, vector<128x128xf32>, vector<256x128xf32> -> vector<256x128xf32>
      %c0_17 = arith.constant 0 : index
      %c0_18 = arith.constant 0 : index
      %20 = vector.load %arg6[%c0_17, %c0_18] : memref<1x128xf32, #tpu.memory_space<vmem>>, vector<1x128xf32>
      %21 = vector.broadcast %20 : vector<1x128xf32> to vector<256x128xf32>
      %22 = arith.addf %19, %21 : vector<256x128xf32>
      %cst_19 = arith.constant 0.000000e+00 : f32
      %23 = vector.broadcast %cst_19 : f32 to vector<256x128xf32>
      %24 = arith.subf %23, %22 : vector<256x128xf32>
      %25 = math.exp %24 : vector<256x128xf32>
      %cst_20 = arith.constant 1.000000e+00 : f32
      %26 = vector.broadcast %cst_20 : f32 to vector<256x128xf32>
      %27 = arith.addf %26, %25 : vector<256x128xf32>
      %28 = tpu.reciprocal %27 {approx = true} : vector<256x128xf32> -> vector<256x128xf32>
      %c0_21 = arith.constant 0 : index
      %c0_22 = arith.constant 0 : index
      %29 = vector.load %arg7[%c0_21, %c0_22] : memref<256x128xf32, #tpu.memory_space<vmem>>, vector<256x128xf32>
      tpu.vector_store %arg7[%c0_21, %c0_22], %28 {strides = array<i32>} : memref<256x128xf32, #tpu.memory_space<vmem>>, vector<256x128xf32>,
    } else {
    }
    return
  }
  func.func @transform_0(%arg0: i32, %arg1: i32) -> (i32, i32) {
    %c0_i32 = arith.constant 0 : i32
    return %arg0, %arg1 : i32, i32
  }
  func.func @transform_1(%arg0: i32, %arg1: i32) -> (i32, i32) {
    %c0_i32 = arith.constant 0 : i32
    %c0_i32_0 = arith.constant 0 : i32
    return %arg1, %c0_i32 : i32, i32
  }
  func.func @transform_2(%arg0: i32, %arg1: i32) -> (i32, i32) {
    %c0_i32 = arith.constant 0 : i32
    %c0_i32_0 = arith.constant 0 : i32
    %c0_i32_1 = arith.constant 0 : i32
    return %c0_i32, %c0_i32_0 : i32, i32
  }
  func.func @transform_3(%arg0: i32, %arg1: i32) -> (i32, i32) {
    %c0_i32 = arith.constant 0 : i32
    %c0_i32_0 = arith.constant 0 : i32
    %c0_i32_1 = arith.constant 0 : i32
    return %c0_i32, %c0_i32_0 : i32, i32
  }
  func.func @transform_4(%arg0: i32, %arg1: i32) -> (i32, i32) {
    %c0_i32 = arith.constant 0 : i32
    %c0_i32_0 = arith.constant 0 : i32
    %c0_i32_1 = arith.constant 0 : i32
    return %c0_i32, %c0_i32_0 : i32, i32
  }
  func.func @transform_5(%arg0: i32, %arg1: i32) -> (i32, i32) {
    %c0_i32 = arith.constant 0 : i32
    %c0_i32_0 = arith.constant 0 : i32
    return %arg0, %c0_i32 : i32, i32
  }
}

</mosaic_0001>

<llo_original>
// kernel: tpu_custom_call.1
$region0: #{tpu_custom_call.1}
  #allocation0 [shape = 'u32[]', space=smem, size = 0x4, offset = 0x4, fixed_abs, tag = 'smem constant byte address 0x4 - core index']
  #allocation1 [shape = 'u32[72,128]{1,0:T(1,128)}', space=vmem, size = 0x9000, scoped, tag = 'internal scratch']
  #allocation2 [shape = 'f32[256,128]{1,0:T(8,128)}', space=vmem, size = 0x20000, scoped, tag = 'scratch operand']
  %s0 = inlined_call_operand.hbm [shape: f32[512,384], index: 0, kind: input, shape index: {}]
  %s1 = inlined_call_operand.hbm [shape: f32[384,128], index: 1, kind: input, shape index: {}]
  %s2 = inlined_call_operand.vmem [shape: f32[1,128], index: 2, kind: input, shape index: {}]
  %s3 = inlined_call_operand.hbm [shape: f32[128,128], index: 3, kind: input, shape index: {}]
  %s4 = inlined_call_operand.vmem [shape: f32[1,128], index: 4, kind: input, shape index: {}]
  %s5 = inlined_call_operand.hbm [shape: f32[512,128], index: 5, kind: output, shape index: {}]
  %s6 = sld [smem:[#allocation0]]
  $region73: #{tpu_custom_call.1} parent=0
    _
  %s8 = ssub.s32 1, %s6
  %s9 = scalar_select 0, %s8, %s6
  $region1: #{tpu_custom_call.1} parent=0
    #allocation3 [shape = 'u8[262144]{0}', space=vmem, size = 0x40000, scoped, tag = 'input window, operand 0']
    #allocation4 [shape = 's32[2]{0}', space=sflag, size = 0x8, scoped, tag = 'scoped memory for tpu_custom_call.1']
    #allocation5 [shape = 's32[2]{0}', space=sflag, size = 0x8, scoped, tag = 'scoped memory for tpu_custom_call.1']
    #allocation6 [shape = 'u8[131072]{0}', space=vmem, size = 0x20000, scoped, tag = 'input window, operand 1']
    #allocation7 [shape = 's32[2]{0}', space=sflag, size = 0x8, scoped, tag = 'scoped memory for tpu_custom_call.1']
    #allocation8 [shape = 'u8[65536]{0}', space=vmem, size = 0x10000, scoped, tag = 'input window, operand 3, single buffered']
    #allocation9 [shape = 'u8[262144]{0}', space=vmem, size = 0x40000, scoped, tag = 'output window, operand 0']
    %10 = vsyncpa [#allocation4], 0
    %s11 = scalar_lea.sflag [#allocation4], 1
    %12 = vsyncpa %s11, 0
    %13 = vsyncpa [#allocation7], 0
    %s14 = scalar_lea.sflag [#allocation7], 1
    %15 = vsyncpa %s14, 0
    %16 = vsyncpa [#allocation5], 0
    %s17 = scalar_lea.sflag [#allocation5], 1
    %18 = vsyncpa %s17, 0
    loop: start=0, step=1, limit=8
    $region2: #{tpu_custom_call.1} parent=1 // loop_pre_header
      _
    $region3: #{tpu_custom_call.1} parent=1 // loop_header
      %s20 = sphi 0, %s24
      %p21 = scmp.ge.s32.totalorder %s20, 8
      %s27 = sphi 0, %s39
      %s28 = sphi 0, %s35
      %s29 = sphi 0, %s27
      %s30 = sphi 0, %s28
      %s31 = sphi 0, %s29
      %s32 = sphi 0, %s30
      %s44 = sphi 0, %s46
      %s47 = sphi 0, %s44
      %s48 = sphi 0, %s47
      %s64 = sphi 0, %s48
      %s70 = sphi 0, %s72
      %s73 = sphi 0, %s70
      %s74 = sphi 0, %s73
      %s90 = sphi 0, %s74
      %s94 = sphi 0, %s94
      %s96 = sphi 0, %s94
      %s97 = sphi 0, %s96
      %s111 = sphi 0, %s97
      %s115 = sphi 0, %s115
      %s117 = sphi 0, %s115
      %s118 = sphi 0, %s117
      %s132 = sphi 0, %s118
      %s136 = sphi 0, %s136
      %s138 = sphi 0, %s136
      %s139 = sphi 0, %s138
      %s153 = sphi 0, %s139
      %s159 = sphi 0, %s161
      %s162 = sphi 0, %s159
      %s163 = sphi 0, %s162
      %s179 = sphi 0, %s163
    $region4: #{tpu_custom_call.1} parent=1 // loop_header_branch
      %23 = sbr.rel (%p21) target = $region8
    $region5: #{tpu_custom_call.1} parent=1 // loop_body
      %s25 = ssub.s32 %s20, 1
      %s26 = ssub.s32 %s20, 2
      %s33 = sadd.s32 1, %s28
      %p34 = scmp.ge.s32.totalorder %s33, 3
      %s35 = scalar_select %p34, 0, %s33
      %s36 = sadd.s32 1, %s27
      %s37 = scalar_select %p34, %s36, %s27
      %p38 = scmp.ge.s32.totalorder %s37, 2
      %s39 = scalar_select %p38, 0, %s37
      %s40 = ssub.s32 %s27, %s39
      %s41 = ssub.s32 %s28, %s35
      %s42 = sor.u32 %s40, %s41
      %p43 = scmp.eq.s32.totalorder %s42, 0
      %s45 = sadd.s32 %s44, 1
      %s46 = scalar_select %p43, %s44, %s45
      %p49 = pneg %p43
      %p50 = scmp.eq.s32.totalorder %s20, 5
      %p51 = por %p49, %p50
      %p52 = scmp.ne.s32.totalorder %s44, %s47
      %p53 = scmp.eq.s32.totalorder %s20, 0
      %p54 = por %p52, %p53
      %p55 = scmp.ne.s32.totalorder %s44, %s47
      %p56 = scmp.eq.s32.totalorder %s25, 5
      %p57 = por %p55, %p56
      %p58 = scmp.ne.s32.totalorder %s47, %s48
      %p59 = scmp.eq.s32.totalorder %s25, 0
      %p60 = por %p58, %p59
      %p61 = scmp.ne.s32.totalorder %s47, %s48
      %p62 = scmp.eq.s32.totalorder %s26, 5
      %p63 = por %p61, %p62
      %p65 = scmp.ne.s32.totalorder %s48, %s64
      %p66 = scmp.eq.s32.totalorder %s26, 0
      %p67 = por %p65, %p66
      %s68 = ssub.s32 %s28, %s35
      %p69 = scmp.eq.s32.totalorder %s68, 0
      %s71 = sadd.s32 %s70, 1
      %s72 = scalar_select %p69, %s70, %s71
      %p75 = pneg %p69
      %p76 = scmp.eq.s32.totalorder %s20, 5
      %p77 = por %p75, %p76
      %p78 = scmp.ne.s32.totalorder %s70, %s73
      %p79 = scmp.eq.s32.totalorder %s20, 0
      %p80 = por %p78, %p79
      %p81 = scmp.ne.s32.totalorder %s70, %s73
      %p82 = scmp.eq.s32.totalorder %s25, 5
      %p83 = por %p81, %p82
      %p84 = scmp.ne.s32.totalorder %s73, %s74
      %p85 = scmp.eq.s32.totalorder %s25, 0
      %p86 = por %p84, %p85
      %p87 = scmp.ne.s32.totalorder %s73, %s74
      %p88 = scmp.eq.s32.totalorder %s26, 5
      %p89 = por %p87, %p88
      %p91 = scmp.ne.s32.totalorder %s74, %s90
      %p92 = scmp.eq.s32.totalorder %s26, 0
      %p93 = por %p91, %p92
      %s95 = sadd.s32 %s94, 1
      %p98 = scmp.eq.s32.totalorder %s20, 5
      %p99 = scmp.ne.s32.totalorder %s94, %s96
      %p100 = scmp.eq.s32.totalorder %s20, 0
      %p101 = por %p99, %p100
      %p102 = scmp.ne.s32.totalorder %s94, %s96
      %p103 = scmp.eq.s32.totalorder %s25, 5
      %p104 = por %p102, %p103
      %p105 = scmp.ne.s32.totalorder %s96, %s97
      %p106 = scmp.eq.s32.totalorder %s25, 0
      %p107 = por %p105, %p106
      %p108 = scmp.ne.s32.totalorder %s96, %s97
      %p109 = scmp.eq.s32.totalorder %s26, 5
      %p110 = por %p108, %p109
      %p112 = scmp.ne.s32.totalorder %s97, %s111
      %p113 = scmp.eq.s32.totalorder %s26, 0
      %p114 = por %p112, %p113
      %s116 = sadd.s32 %s115, 1
      %p119 = scmp.eq.s32.totalorder %s20, 5
      %p120 = scmp.ne.s32.totalorder %s115, %s117
      %p121 = scmp.eq.s32.totalorder %s20, 0
      %p122 = por %p120, %p121
      %p123 = scmp.ne.s32.totalorder %s115, %s117
      %p124 = scmp.eq.s32.totalorder %s25, 5
      %p125 = por %p123, %p124
      %p126 = scmp.ne.s32.totalorder %s117, %s118
      %p127 = scmp.eq.s32.totalorder %s25, 0
      %p128 = por %p126, %p127
      %p129 = scmp.ne.s32.totalorder %s117, %s118
      %p130 = scmp.eq.s32.totalorder %s26, 5
      %p131 = por %p129, %p130
      %p133 = scmp.ne.s32.totalorder %s118, %s132
      %p134 = scmp.eq.s32.totalorder %s26, 0
      %p135 = por %p133, %p134
      %s137 = sadd.s32 %s136, 1
      %p140 = scmp.eq.s32.totalorder %s20, 5
      %p141 = scmp.ne.s32.totalorder %s136, %s138
      %p142 = scmp.eq.s32.totalorder %s20, 0
      %p143 = por %p141, %p142
      %p144 = scmp.ne.s32.totalorder %s136, %s138
      %p145 = scmp.eq.s32.totalorder %s25, 5
      %p146 = por %p144, %p145
      %p147 = scmp.ne.s32.totalorder %s138, %s139
      %p148 = scmp.eq.s32.totalorder %s25, 0
      %p149 = por %p147, %p148
      %p150 = scmp.ne.s32.totalorder %s138, %s139
      %p151 = scmp.eq.s32.totalorder %s26, 5
      %p152 = por %p150, %p151
      %p154 = scmp.ne.s32.totalorder %s139, %s153
      %p155 = scmp.eq.s32.totalorder %s26, 0
      %p156 = por %p154, %p155
      %s157 = ssub.s32 %s27, %s39
      %p158 = scmp.eq.s32.totalorder %s157, 0
      %s160 = sadd.s32 %s159, 1
      %s161 = scalar_select %p158, %s159, %s160
      %p164 = pneg %p158
      %p165 = scmp.eq.s32.totalorder %s20, 5
      %p166 = por %p164, %p165
      %p167 = scmp.ne.s32.totalorder %s159, %s162
      %p168 = scmp.eq.s32.totalorder %s20, 0
      %p169 = por %p167, %p168
      %p170 = scmp.ne.s32.totalorder %s159, %s162
      %p171 = scmp.eq.s32.totalorder %s25, 5
      %p172 = por %p170, %p171
      %p173 = scmp.ne.s32.totalorder %s162, %s163
      %p174 = scmp.eq.s32.totalorder %s25, 0
      %p175 = por %p173, %p174
      %p176 = scmp.ne.s32.totalorder %s162, %s163
      %p177 = scmp.eq.s32.totalorder %s26, 5
      %p178 = por %p176, %p177
      %p180 = scmp.ne.s32.totalorder %s163, %s179
      %p181 = scmp.eq.s32.totalorder %s26, 0
      %p182 = por %p180, %p181
      %p183 = scmp.le.s32.totalorder 1, %s20
      %p184 = scmp.lt.s32.totalorder %s20, 7
      %p185 = pnand %p183, %p184
      %p186 = pneg %p185
      // Predicated region
      $region9: #{tpu_custom_call.1} parent=5 // pred_check
        _
      $region10: #{tpu_custom_call.1} parent=5 // pred_check_branch
        %188 = sbr.rel (%p185) target = $region12
      $region11: #{tpu_custom_call.1} parent=5 // pred_region
        %s189 = ssub.s32 %s20, 1
        // Predicated region
        $region13: #{tpu_custom_call.1} parent=11 // pred_check
          %p190 = pneg %p107
        $region14: #{tpu_custom_call.1} parent=11 // pred_check_branch
          %192 = sbr.rel (%p190) target = $region16
        $region15: #{tpu_custom_call.1} parent=11 // pred_region
          _
        $region16: #{tpu_custom_call.1} parent=11 // pred_fallthru
          _
        // Predicated region
        $region17: #{tpu_custom_call.1} parent=11 // pred_check
          %p193 = pneg %p128
        $region18: #{tpu_custom_call.1} parent=11 // pred_check_branch
          %195 = sbr.rel (%p193) target = $region20
        $region19: #{tpu_custom_call.1} parent=11 // pred_region
          %197 = vsyncadd [#allocation7], 0
          %s198 = sshll.u32 %s3, 4
          %s199 = int_to_ptr.hbm [resolvable:$true] %s198
          %s200 = sshll.u32 [#allocation8], 4
          %s201 = int_to_ptr.vmem [resolvable:$true] %s200
          %206 = dma.hbm_to_vmem [thread:$0]  %s199, 2048, %s201, [#allocation7], 128, 128, 8
        $region20: #{tpu_custom_call.1} parent=11 // pred_fallthru
          _
        // Predicated region
        $region21: #{tpu_custom_call.1} parent=11 // pred_check
          %p207 = pneg %p149
        $region22: #{tpu_custom_call.1} parent=11 // pred_check_branch
          %209 = sbr.rel (%p207) target = $region24
        $region23: #{tpu_custom_call.1} parent=11 // pred_region
          _
        $region24: #{tpu_custom_call.1} parent=11 // pred_fallthru
          _
      $region12: #{tpu_custom_call.1} parent=5 // pred_fallthru
        _
      %p210 = scmp.lt.s32.totalorder %s20, 6
      // Predicated region
      $region25: #{tpu_custom_call.1} parent=5 // pred_check
        %p211 = pneg %p210
      $region26: #{tpu_custom_call.1} parent=5 // pred_check_branch
        %213 = sbr.rel (%p211) target = $region28
      $region27: #{tpu_custom_call.1} parent=5 // pred_region
        // Predicated region
        $region29: #{tpu_custom_call.1} parent=27 // pred_check
          %p214 = pneg %p54
        $region30: #{tpu_custom_call.1} parent=27 // pred_check_branch
          %216 = sbr.rel (%p214) target = $region32
        $region31: #{tpu_custom_call.1} parent=27 // pred_region
          %s217 = sand.u32 %s44, 1
          %s218 = scalar_lea.sflag [#allocation4], %s217
          %s219 = sand.u32 %s44, 1
          %s220 = smul.addr %s219, 256
          %s221 = scalar_lea.vmem [#allocation3], %s220
          %s222 = smul.u32 32, %s27
          %224 = vsyncadd %s218, 0
          %s225 = smul.addr %s222, 3
          %s226 = sadd.s32 %s28, %s225
          %s227 = smul.addr %s226, 8
          %s228 = scalar_lea.hbm %s0, %s227
          %s229 = sshll.u32 %s228, 4
          %s230 = int_to_ptr.hbm [resolvable:$true] %s229
          %s231 = sshll.u32 %s221, 4
          %s232 = int_to_ptr.vmem [resolvable:$true] %s231
          %237 = dma.hbm_to_vmem [thread:$0]  %s230, 4096, %s232, %s218, 384, 128, 8
        $region32: #{tpu_custom_call.1} parent=27 // pred_fallthru
          _
        // Predicated region
        $region33: #{tpu_custom_call.1} parent=27 // pred_check
          %p238 = pneg %p80
        $region34: #{tpu_custom_call.1} parent=27 // pred_check_branch
          %240 = sbr.rel (%p238) target = $region36
        $region35: #{tpu_custom_call.1} parent=27 // pred_region
          %s241 = sand.u32 %s20, 1
          %s242 = scalar_lea.sflag [#allocation7], %s241
          %s243 = sand.u32 %s70, 1
          %s244 = smul.addr %s243, 128
          %s245 = scalar_lea.vmem [#allocation6], %s244
          %s246 = smul.u32 16, %s28
          %248 = vsyncadd %s242, 0
          %s249 = smul.addr %s246, 8
          %s250 = scalar_lea.hbm %s1, %s249
          %s251 = sshll.u32 %s250, 4
          %s252 = int_to_ptr.hbm [resolvable:$true] %s251
          %s253 = sshll.u32 %s245, 4
          %s254 = int_to_ptr.vmem [resolvable:$true] %s253
          %259 = dma.hbm_to_vmem [thread:$0]  %s252, 2048, %s254, %s242, 128, 128, 8
        $region36: #{tpu_custom_call.1} parent=27 // pred_fallthru
          _
      $region28: #{tpu_custom_call.1} parent=5 // pred_fallthru
        _
      %p260 = scmp.le.s32.totalorder 1, %s20
      %p261 = scmp.lt.s32.totalorder %s20, 7
      %p262 = pnand %p260, %p261
      %p263 = pneg %p262
      // Predicated region
      $region37: #{tpu_custom_call.1} parent=5 // pred_check
        _
      $region38: #{tpu_custom_call.1} parent=5 // pred_check_branch
        %265 = sbr.rel (%p262) target = $region40
      $region39: #{tpu_custom_call.1} parent=5 // pred_region
        %s266 = ssub.s32 %s20, 1
        %s267 = sand.u32 %s47, 1
        %s268 = scalar_lea.sflag [#allocation4], %s267
        %s269 = sand.u32 %s47, 1
        %s270 = smul.addr %s269, 256
        %s271 = scalar_lea.vmem [#allocation3], %s270
        // Predicated region
        $region41: #{tpu_custom_call.1} parent=39 // pred_check
          %p272 = pneg %p60
        $region42: #{tpu_custom_call.1} parent=39 // pred_check_branch
          %274 = sbr.rel (%p272) target = $region44
        $region43: #{tpu_custom_call.1} parent=39 // pred_region
          %276 = dma.done %s268, 4096
        $region44: #{tpu_custom_call.1} parent=39 // pred_fallthru
          _
        %s277 = sand.u32 %s25, 1
        %s278 = scalar_lea.sflag [#allocation7], %s277
        %s279 = sand.u32 %s73, 1
        %s280 = smul.addr %s279, 128
        %s281 = scalar_lea.vmem [#allocation6], %s280
        // Predicated region
        $region45: #{tpu_custom_call.1} parent=39 // pred_check
          %p282 = pneg %p86
        $region46: #{tpu_custom_call.1} parent=39 // pred_check_branch
          %284 = sbr.rel (%p282) target = $region48
        $region47: #{tpu_custom_call.1} parent=39 // pred_region
          %286 = dma.done %s278, 2048
        $region48: #{tpu_custom_call.1} parent=39 // pred_fallthru
          _
        // Predicated region
        $region49: #{tpu_custom_call.1} parent=39 // pred_check
          %p287 = pneg %p128
        $region50: #{tpu_custom_call.1} parent=39 // pred_check_branch
          %289 = sbr.rel (%p287) target = $region52
        $region51: #{tpu_custom_call.1} parent=39 // pred_region
          %291 = dma.done [#allocation7], 2048
        $region52: #{tpu_custom_call.1} parent=39 // pred_fallthru
          _
        %s292 = sand.u32 %s47, 1
        %s293 = scalar_lea.sflag [#allocation4], %s292
        %s294 = sand.u32 %s47, 1
        %s295 = smul.addr %s294, 256
        %s296 = scalar_lea.vmem [#allocation3], %s295
        %p297 = pneg %p60
        %p298 = pneg %p57
        %s299 = sand.u32 %s25, 1
        %s300 = scalar_lea.sflag [#allocation7], %s299
        %s301 = sand.u32 %s73, 1
        %s302 = smul.addr %s301, 128
        %s303 = scalar_lea.vmem [#allocation6], %s302
        %p304 = pneg %p86
        %p305 = pneg %p83
        %p306 = pneg %p107
        %p307 = pneg %p104
        %p308 = pneg %p128
        %p309 = pneg %p125
        %p310 = pneg %p149
        %p311 = pneg %p146
        %p312 = pneg %p175
        %p313 = pneg %p172
        %s314 = sand.u32 %s162, 1
        %s315 = scalar_lea.sflag [#allocation5], %s314
        %s316 = sand.u32 %s162, 1
        %s317 = smul.addr %s316, 256
        %s318 = scalar_lea.vmem [#allocation9], %s317
        %s319 = smul.u32 32, %s29
        %s320 = smul.u32 16, %s30
        %s321 = smul.u32 32, %s29
        %p322 = scmp.eq.s32.totalorder %s30, 0
        // Predicated region
        $region53: #{tpu_custom_call.1} parent=39 // pred_check
          %p323 = pneg %p322
        $region54: #{tpu_custom_call.1} parent=39 // pred_check_branch
          %325 = sbr.rel (%p323) target = $region56
        $region55: #{tpu_custom_call.1} parent=39 // pred_region
          %326 = vst [vmem:[#allocation2] sm:$0xff] 0.0
          %327 = vst [vmem:[#allocation2 + $0x8] sm:$0xff] 0.0
          %328 = vst [vmem:[#allocation2 + $0x10] sm:$0xff] 0.0
          %329 = vst [vmem:[#allocation2 + $0x18] sm:$0xff] 0.0
          %330 = vst [vmem:[#allocation2 + $0x20] sm:$0xff] 0.0
          %331 = vst [vmem:[#allocation2 + $0x28] sm:$0xff] 0.0
          %332 = vst [vmem:[#allocation2 + $0x30] sm:$0xff] 0.0
          %333 = vst [vmem:[#allocation2 + $0x38] sm:$0xff] 0.0
          %334 = vst [vmem:[#allocation2 + $0x40] sm:$0xff] 0.0
          %335 = vst [vmem:[#allocation2 + $0x48] sm:$0xff] 0.0
          %336 = vst [vmem:[#allocation2 + $0x50] sm:$0xff] 0.0
          %337 = vst [vmem:[#allocation2 + $0x58] sm:$0xff] 0.0
          %338 = vst [vmem:[#allocation2 + $0x60] sm:$0xff] 0.0
          %339 = vst [vmem:[#allocation2 + $0x68] sm:$0xff] 0.0
          %340 = vst [vmem:[#allocation2 + $0x70] sm:$0xff] 0.0
          %341 = vst [vmem:[#allocation2 + $0x78] sm:$0xff] 0.0
          %342 = vst [vmem:[#allocation2 + $0x80] sm:$0xff] 0.0
          %343 = vst [vmem:[#allocation2 + $0x88] sm:$0xff] 0.0
          %344 = vst [vmem:[#allocation2 + $0x90] sm:$0xff] 0.0
          %345 = vst [vmem:[#allocation2 + $0x98] sm:$0xff] 0.0
          %346 = vst [vmem:[#allocation2 + $0xa0] sm:$0xff] 0.0
          %347 = vst [vmem:[#allocation2 + $0xa8] sm:$0xff] 0.0
          %348 = vst [vmem:[#allocation2 + $0xb0] sm:$0xff] 0.0
          %349 = vst [vmem:[#allocation2 + $0xb8] sm:$0xff] 0.0
          %350 = vst [vmem:[#allocation2 + $0xc0] sm:$0xff] 0.0
          %351 = vst [vmem:[#allocation2 + $0xc8] sm:$0xff] 0.0
          %352 = vst [vmem:[#allocation2 + $0xd0] sm:$0xff] 0.0
          %353 = vst [vmem:[#allocation2 + $0xd8] sm:$0xff] 0.0
          %354 = vst [vmem:[#allocation2 + $0xe0] sm:$0xff] 0.0
          %355 = vst [vmem:[#allocation2 + $0xe8] sm:$0xff] 0.0
          %356 = vst [vmem:[#allocation2 + $0xf0] sm:$0xff] 0.0
          %357 = vst [vmem:[#allocation2 + $0xf8] sm:$0xff] 0.0
        $region56: #{tpu_custom_call.1} parent=39 // pred_fallthru
          _
        %v358 = vld [vmem:[#allocation2] sm:$0xff]
        %v359 = vld [vmem:[#allocation2 + $0x8] sm:$0xff]
        %v360 = vld [vmem:[#allocation2 + $0x10] sm:$0xff]
        %v361 = vld [vmem:[#allocation2 + $0x18] sm:$0xff]
        %v362 = vld [vmem:[#allocation2 + $0x20] sm:$0xff]
        %v363 = vld [vmem:[#allocation2 + $0x28] sm:$0xff]
        %v364 = vld [vmem:[#allocation2 + $0x30] sm:$0xff]
        %v365 = vld [vmem:[#allocation2 + $0x38] sm:$0xff]
        %v366 = vld [vmem:[#allocation2 + $0x40] sm:$0xff]
        %v367 = vld [vmem:[#allocation2 + $0x48] sm:$0xff]
        %v368 = vld [vmem:[#allocation2 + $0x50] sm:$0xff]
        %v369 = vld [vmem:[#allocation2 + $0x58] sm:$0xff]
        %v370 = vld [vmem:[#allocation2 + $0x60] sm:$0xff]
        %v371 = vld [vmem:[#allocation2 + $0x68] sm:$0xff]
        %v372 = vld [vmem:[#allocation2 + $0x70] sm:$0xff]
        %v373 = vld [vmem:[#allocation2 + $0x78] sm:$0xff]
        %v374 = vld [vmem:[#allocation2 + $0x80] sm:$0xff]
        %v375 = vld [vmem:[#allocation2 + $0x88] sm:$0xff]
        %v376 = vld [vmem:[#allocation2 + $0x90] sm:$0xff]
        %v377 = vld [vmem:[#allocation2 + $0x98] sm:$0xff]
        %v378 = vld [vmem:[#allocation2 + $0xa0] sm:$0xff]
        %v379 = vld [vmem:[#allocation2 + $0xa8] sm:$0xff]
        %v380 = vld [vmem:[#allocation2 + $0xb0] sm:$0xff]
        %v381 = vld [vmem:[#allocation2 + $0xb8] sm:$0xff]
        %v382 = vld [vmem:[#allocation2 + $0xc0] sm:$0xff]
        %v383 = vld [vmem:[#allocation2 + $0xc8] sm:$0xff]
        %v384 = vld [vmem:[#allocation2 + $0xd0] sm:$0xff]
        %v385 = vld [vmem:[#allocation2 + $0xd8] sm:$0xff]
        %v386 = vld [vmem:[#allocation2 + $0xe0] sm:$0xff]
        %v387 = vld [vmem:[#allocation2 + $0xe8] sm:$0xff]
        %v388 = vld [vmem:[#allocation2 + $0xf0] sm:$0xff]
        %v389 = vld [vmem:[#allocation2 + $0xf8] sm:$0xff]
        %v390 = vld [vmem:[%s271] sm:$0xff]
        %v391 = vld [vmem:[%s271 + $0x8] sm:$0xff]
        %v392 = vld [vmem:[%s271 + $0x10] sm:$0xff]
        %v393 = vld [vmem:[%s271 + $0x18] sm:$0xff]
        %v394 = vld [vmem:[%s271 + $0x20] sm:$0xff]
        %v395 = vld [vmem:[%s271 + $0x28] sm:$0xff]
        %v396 = vld [vmem:[%s271 + $0x30] sm:$0xff]
        %v397 = vld [vmem:[%s271 + $0x38] sm:$0xff]
        %v398 = vld [vmem:[%s271 + $0x40] sm:$0xff]
        %v399 = vld [vmem:[%s271 + $0x48] sm:$0xff]
        %v400 = vld [vmem:[%s271 + $0x50] sm:$0xff]
        %v401 = vld [vmem:[%s271 + $0x58] sm:$0xff]
        %v402 = vld [vmem:[%s271 + $0x60] sm:$0xff]
        %v403 = vld [vmem:[%s271 + $0x68] sm:$0xff]
        %v404 = vld [vmem:[%s271 + $0x70] sm:$0xff]
        %v405 = vld [vmem:[%s271 + $0x78] sm:$0xff]
        %v406 = vld [vmem:[%s271 + $0x80] sm:$0xff]
        %v407 = vld [vmem:[%s271 + $0x88] sm:$0xff]
        %v408 = vld [vmem:[%s271 + $0x90] sm:$0xff]
        %v409 = vld [vmem:[%s271 + $0x98] sm:$0xff]
        %v410 = vld [vmem:[%s271 + $0xa0] sm:$0xff]
        %v411 = vld [vmem:[%s271 + $0xa8] sm:$0xff]
        %v412 = vld [vmem:[%s271 + $0xb0] sm:$0xff]
        %v413 = vld [vmem:[%s271 + $0xb8] sm:$0xff]
        %v414 = vld [vmem:[%s271 + $0xc0] sm:$0xff]
        %v415 = vld [vmem:[%s271 + $0xc8] sm:$0xff]
        %v416 = vld [vmem:[%s271 + $0xd0] sm:$0xff]
        %v417 = vld [vmem:[%s271 + $0xd8] sm:$0xff]
        %v418 = vld [vmem:[%s271 + $0xe0] sm:$0xff]
        %v419 = vld [vmem:[%s271 + $0xe8] sm:$0xff]
        %v420 = vld [vmem:[%s271 + $0xf0] sm:$0xff]
        %v421 = vld [vmem:[%s271 + $0xf8] sm:$0xff]
        %v422 = vld [vmem:[%s281] sm:$0xff]
        %v423 = vld [vmem:[%s281 + $0x8] sm:$0xff]
        %v424 = vld [vmem:[%s281 + $0x10] sm:$0xff]
        %v425 = vld [vmem:[%s281 + $0x18] sm:$0xff]
        %v426 = vld [vmem:[%s281 + $0x20] sm:$0xff]
        %v427 = vld [vmem:[%s281 + $0x28] sm:$0xff]
        %v428 = vld [vmem:[%s281 + $0x30] sm:$0xff]
        %v429 = vld [vmem:[%s281 + $0x38] sm:$0xff]
        %v430 = vld [vmem:[%s281 + $0x40] sm:$0xff]
        %v431 = vld [vmem:[%s281 + $0x48] sm:$0xff]
        %v432 = vld [vmem:[%s281 + $0x50] sm:$0xff]
        %v433 = vld [vmem:[%s281 + $0x58] sm:$0xff]
        %v434 = vld [vmem:[%s281 + $0x60] sm:$0xff]
        %v435 = vld [vmem:[%s281 + $0x68] sm:$0xff]
        %v436 = vld [vmem:[%s281 + $0x70] sm:$0xff]
        %v437 = vld [vmem:[%s281 + $0x78] sm:$0xff]
        %438 = vmatpush.msra.mxu0 %v437
        %439 = vmatpush.msra.mxu0 %v436
        %440 = vmatpush.msra.mxu0 %v435
        %441 = vmatpush.msra.mxu0 %v434
        %442 = vmatpush.msra.mxu0 %v433
        %443 = vmatpush.msra.mxu0 %v432
        %444 = vmatpush.msra.mxu0 %v431
        %445 = vmatpush.msra.mxu0 %v430
        %446 = vmatpush.msra.mxu0 %v429
        %447 = vmatpush.msra.mxu0 %v428
        %448 = vmatpush.msra.mxu0 %v427
        %449 = vmatpush.msra.mxu0 %v426
        %450 = vmatpush.msra.mxu0 %v425
        %451 = vmatpush.msra.mxu0 %v424
        %452 = vmatpush.msra.mxu0 %v423
        %453 = vmatpush.msra.mxu0 %v422
        %454 = vmatmul.f32.gmra.mxu0 %v390
        %v455 = vpop.f32.mrf.mxu0
        %v456 = vadd.f32 0.0, %v455
        %457 = vmatmul.f32.gmra.mxu0 %v391
        %v458 = vpop.f32.mrf.mxu0
        %v459 = vadd.f32 0.0, %v458
        %460 = vmatmul.f32.gmra.mxu0 %v392
        %v461 = vpop.f32.mrf.mxu0
        %v462 = vadd.f32 0.0, %v461
        %463 = vmatmul.f32.gmra.mxu0 %v393
        %v464 = vpop.f32.mrf.mxu0
        %v465 = vadd.f32 0.0, %v464
        %466 = vmatmul.f32.gmra.mxu0 %v394
        %v467 = vpop.f32.mrf.mxu0
        %v468 = vadd.f32 0.0, %v467
        %469 = vmatmul.f32.gmra.mxu0 %v395
        %v470 = vpop.f32.mrf.mxu0
        %v471 = vadd.f32 0.0, %v470
        %472 = vmatmul.f32.gmra.mxu0 %v396
        %v473 = vpop.f32.mrf.mxu0
        %v474 = vadd.f32 0.0, %v473
        %475 = vmatmul.f32.gmra.mxu0 %v397
        %v476 = vpop.f32.mrf.mxu0
        %v477 = vadd.f32 0.0, %v476
        %478 = vmatmul.f32.gmra.mxu0 %v398
        %v479 = vpop.f32.mrf.mxu0
        %v480 = vadd.f32 0.0, %v479
        %481 = vmatmul.f32.gmra.mxu0 %v399
        %v482 = vpop.f32.mrf.mxu0
        %v483 = vadd.f32 0.0, %v482
        %484 = vmatmul.f32.gmra.mxu0 %v400
        %v485 = vpop.f32.mrf.mxu0
        %v486 = vadd.f32 0.0, %v485
        %487 = vmatmul.f32.gmra.mxu0 %v401
        %v488 = vpop.f32.mrf.mxu0
        %v489 = vadd.f32 0.0, %v488
        %490 = vmatmul.f32.gmra.mxu0 %v402
        %v491 = vpop.f32.mrf.mxu0
        %v492 = vadd.f32 0.0, %v491
        %493 = vmatmul.f32.gmra.mxu0 %v403
        %v494 = vpop.f32.mrf.mxu0
        %v495 = vadd.f32 0.0, %v494
        %496 = vmatmul.f32.gmra.mxu0 %v404
        %v497 = vpop.f32.mrf.mxu0
        %v498 = vadd.f32 0.0, %v497
        %499 = vmatmul.f32.gmra.mxu0 %v405
        %v500 = vpop.f32.mrf.mxu0
        %v501 = vadd.f32 0.0, %v500
        %502 = vmatmul.f32.gmra.mxu0 %v406
        %v503 = vpop.f32.mrf.mxu0
        %v504 = vadd.f32 0.0, %v503
        %505 = vmatmul.f32.gmra.mxu0 %v407
        %v506 = vpop.f32.mrf.mxu0
        %v507 = vadd.f32 0.0, %v506
        %508 = vmatmul.f32.gmra.mxu0 %v408
        %v509 = vpop.f32.mrf.mxu0
        %v510 = vadd.f32 0.0, %v509
        %511 = vmatmul.f32.gmra.mxu0 %v409
        %v512 = vpop.f32.mrf.mxu0
        %v513 = vadd.f32 0.0, %v512
        %514 = vmatmul.f32.gmra.mxu0 %v410
        %v515 = vpop.f32.mrf.mxu0
        %v516 = vadd.f32 0.0, %v515
        %517 = vmatmul.f32.gmra.mxu0 %v411
        %v518 = vpop.f32.mrf.mxu0
        %v519 = vadd.f32 0.0, %v518
        %520 = vmatmul.f32.gmra.mxu0 %v412
        %v521 = vpop.f32.mrf.mxu0
        %v522 = vadd.f32 0.0, %v521
        %523 = vmatmul.f32.gmra.mxu0 %v413
        %v524 = vpop.f32.mrf.mxu0
        %v525 = vadd.f32 0.0, %v524
        %526 = vmatmul.f32.gmra.mxu0 %v414
        %v527 = vpop.f32.mrf.mxu0
        %v528 = vadd.f32 0.0, %v527
        %529 = vmatmul.f32.gmra.mxu0 %v415
        %v530 = vpop.f32.mrf.mxu0
        %v531 = vadd.f32 0.0, %v530
        %532 = vmatmul.f32.gmra.mxu0 %v416
        %v533 = vpop.f32.mrf.mxu0
        %v534 = vadd.f32 0.0, %v533
        %535 = vmatmul.f32.gmra.mxu0 %v417
        %v536 = vpop.f32.mrf.mxu0
        %v537 = vadd.f32 0.0, %v536
        %538 = vmatmul.f32.gmra.mxu0 %v418
        %v539 = vpop.f32.mrf.mxu0
        %v540 = vadd.f32 0.0, %v539
        %541 = vmatmul.f32.gmra.mxu0 %v419
        %v542 = vpop.f32.mrf.mxu0
        %v543 = vadd.f32 0.0, %v542
        %544 = vmatmul.f32.gmra.mxu0 %v420
        %v545 = vpop.f32.mrf.mxu0
        %v546 = vadd.f32 0.0, %v545
        %547 = vmatmul.f32.gmra.mxu0 %v421
        %v548 = vpop.f32.mrf.mxu0
        %v549 = vadd.f32 0.0, %v548
        %550 = vdwg.mxu0
        %v551 = vadd.f32 %v358, %v456
        %v552 = vadd.f32 %v359, %v459
        %v553 = vadd.f32 %v360, %v462
        %v554 = vadd.f32 %v361, %v465
        %v555 = vadd.f32 %v362, %v468
        %v556 = vadd.f32 %v363, %v471
        %v557 = vadd.f32 %v364, %v474
        %v558 = vadd.f32 %v365, %v477
        %v559 = vadd.f32 %v366, %v480
        %v560 = vadd.f32 %v367, %v483
        %v561 = vadd.f32 %v368, %v486
        %v562 = vadd.f32 %v369, %v489
        %v563 = vadd.f32 %v370, %v492
        %v564 = vadd.f32 %v371, %v495
        %v565 = vadd.f32 %v372, %v498
        %v566 = vadd.f32 %v373, %v501
        %v567 = vadd.f32 %v374, %v504
        %v568 = vadd.f32 %v375, %v507
        %v569 = vadd.f32 %v376, %v510
        %v570 = vadd.f32 %v377, %v513
        %v571 = vadd.f32 %v378, %v516
        %v572 = vadd.f32 %v379, %v519
        %v573 = vadd.f32 %v380, %v522
        %v574 = vadd.f32 %v381, %v525
        %v575 = vadd.f32 %v382, %v528
        %v576 = vadd.f32 %v383, %v531
        %v577 = vadd.f32 %v384, %v534
        %v578 = vadd.f32 %v385, %v537
        %v579 = vadd.f32 %v386, %v540
        %v580 = vadd.f32 %v387, %v543
        %v581 = vadd.f32 %v388, %v546
        %v582 = vadd.f32 %v389, %v549
        %583 = vst [vmem:[#allocation2] sm:$0xff] %v551
        %584 = vst [vmem:[#allocation2 + $0x8] sm:$0xff] %v552
        %585 = vst [vmem:[#allocation2 + $0x10] sm:$0xff] %v553
        %586 = vst [vmem:[#allocation2 + $0x18] sm:$0xff] %v554
        %587 = vst [vmem:[#allocation2 + $0x20] sm:$0xff] %v555
        %588 = vst [vmem:[#allocation2 + $0x28] sm:$0xff] %v556
        %589 = vst [vmem:[#allocation2 + $0x30] sm:$0xff] %v557
        %590 = vst [vmem:[#allocation2 + $0x38] sm:$0xff] %v558
        %591 = vst [vmem:[#allocation2 + $0x40] sm:$0xff] %v559
        %592 = vst [vmem:[#allocation2 + $0x48] sm:$0xff] %v560
        %593 = vst [vmem:[#allocation2 + $0x50] sm:$0xff] %v561
        %594 = vst [vmem:[#allocation2 + $0x58] sm:$0xff] %v562
        %595 = vst [vmem:[#allocation2 + $0x60] sm:$0xff] %v563
        %596 = vst [vmem:[#allocation2 + $0x68] sm:$0xff] %v564
        %597 = vst [vmem:[#allocation2 + $0x70] sm:$0xff] %v565
        %598 = vst [vmem:[#allocation2 + $0x78] sm:$0xff] %v566
        %599 = vst [vmem:[#allocation2 + $0x80] sm:$0xff] %v567
        %600 = vst [vmem:[#allocation2 + $0x88] sm:$0xff] %v568
        %601 = vst [vmem:[#allocation2 + $0x90] sm:$0xff] %v569
        %602 = vst [vmem:[#allocation2 + $0x98] sm:$0xff] %v570
        %603 = vst [vmem:[#allocation2 + $0xa0] sm:$0xff] %v571
        %604 = vst [vmem:[#allocation2 + $0xa8] sm:$0xff] %v572
        %605 = vst [vmem:[#allocation2 + $0xb0] sm:$0xff] %v573
        %606 = vst [vmem:[#allocation2 + $0xb8] sm:$0xff] %v574
        %607 = vst [vmem:[#allocation2 + $0xc0] sm:$0xff] %v575
        %608 = vst [vmem:[#allocation2 + $0xc8] sm:$0xff] %v576
        %609 = vst [vmem:[#allocation2 + $0xd0] sm:$0xff] %v577
        %610 = vst [vmem:[#allocation2 + $0xd8] sm:$0xff] %v578
        %611 = vst [vmem:[#allocation2 + $0xe0] sm:$0xff] %v579
        %612 = vst [vmem:[#allocation2 + $0xe8] sm:$0xff] %v580
        %613 = vst [vmem:[#allocation2 + $0xf0] sm:$0xff] %v581
        %614 = vst [vmem:[#allocation2 + $0xf8] sm:$0xff] %v582
        %p615 = scmp.eq.s32.totalorder %s30, 2
        // Predicated region
        $region57: #{tpu_custom_call.1} parent=39 // pred_check
          %p616 = pneg %p615
        $region58: #{tpu_custom_call.1} parent=39 // pred_check_branch
          %618 = sbr.rel (%p616) target = $region60
        $region59: #{tpu_custom_call.1} parent=39 // pred_region
          %v619 = vld [vmem:[#allocation2] sm:$0xff]
          %v620 = vld [vmem:[#allocation2 + $0x8] sm:$0xff]
          %v621 = vld [vmem:[#allocation2 + $0x10] sm:$0xff]
          %v622 = vld [vmem:[#allocation2 + $0x18] sm:$0xff]
          %v623 = vld [vmem:[#allocation2 + $0x20] sm:$0xff]
          %v624 = vld [vmem:[#allocation2 + $0x28] sm:$0xff]
          %v625 = vld [vmem:[#allocation2 + $0x30] sm:$0xff]
          %v626 = vld [vmem:[#allocation2 + $0x38] sm:$0xff]
          %v627 = vld [vmem:[#allocation2 + $0x40] sm:$0xff]
          %v628 = vld [vmem:[#allocation2 + $0x48] sm:$0xff]
          %v629 = vld [vmem:[#allocation2 + $0x50] sm:$0xff]
          %v630 = vld [vmem:[#allocation2 + $0x58] sm:$0xff]
          %v631 = vld [vmem:[#allocation2 + $0x60] sm:$0xff]
          %v632 = vld [vmem:[#allocation2 + $0x68] sm:$0xff]
          %v633 = vld [vmem:[#allocation2 + $0x70] sm:$0xff]
          %v634 = vld [vmem:[#allocation2 + $0x78] sm:$0xff]
          %v635 = vld [vmem:[#allocation2 + $0x80] sm:$0xff]
          %v636 = vld [vmem:[#allocation2 + $0x88] sm:$0xff]
          %v637 = vld [vmem:[#allocation2 + $0x90] sm:$0xff]
          %v638 = vld [vmem:[#allocation2 + $0x98] sm:$0xff]
          %v639 = vld [vmem:[#allocation2 + $0xa0] sm:$0xff]
          %v640 = vld [vmem:[#allocation2 + $0xa8] sm:$0xff]
          %v641 = vld [vmem:[#allocation2 + $0xb0] sm:$0xff]
          %v642 = vld [vmem:[#allocation2 + $0xb8] sm:$0xff]
          %v643 = vld [vmem:[#allocation2 + $0xc0] sm:$0xff]
          %v644 = vld [vmem:[#allocation2 + $0xc8] sm:$0xff]
          %v645 = vld [vmem:[#allocation2 + $0xd0] sm:$0xff]
          %v646 = vld [vmem:[#allocation2 + $0xd8] sm:$0xff]
          %v647 = vld [vmem:[#allocation2 + $0xe0] sm:$0xff]
          %v648 = vld [vmem:[#allocation2 + $0xe8] sm:$0xff]
          %v649 = vld [vmem:[#allocation2 + $0xf0] sm:$0xff]
          %v650 = vld [vmem:[#allocation2 + $0xf8] sm:$0xff]
          %v651 = vld [vmem:[%s2] sm:$0x1]
          %v653 = vperm.slane %v651, 0
          %v655 = vadd.f32 %v619, %v653
          %v656 = vadd.f32 %v620, %v653
          %v657 = vadd.f32 %v621, %v653
          %v658 = vadd.f32 %v622, %v653
          %v659 = vadd.f32 %v623, %v653
          %v660 = vadd.f32 %v624, %v653
          %v661 = vadd.f32 %v625, %v653
          %v662 = vadd.f32 %v626, %v653
          %v663 = vadd.f32 %v627, %v653
          %v664 = vadd.f32 %v628, %v653
          %v665 = vadd.f32 %v629, %v653
          %v666 = vadd.f32 %v630, %v653
          %v667 = vadd.f32 %v631, %v653
          %v668 = vadd.f32 %v632, %v653
          %v669 = vadd.f32 %v633, %v653
          %v670 = vadd.f32 %v634, %v653
          %v671 = vadd.f32 %v635, %v653
          %v672 = vadd.f32 %v636, %v653
          %v673 = vadd.f32 %v637, %v653
          %v674 = vadd.f32 %v638, %v653
          %v675 = vadd.f32 %v639, %v653
          %v676 = vadd.f32 %v640, %v653
          %v677 = vadd.f32 %v641, %v653
          %v678 = vadd.f32 %v642, %v653
          %v679 = vadd.f32 %v643, %v653
          %v680 = vadd.f32 %v644, %v653
          %v681 = vadd.f32 %v645, %v653
          %v682 = vadd.f32 %v646, %v653
          %v683 = vadd.f32 %v647, %v653
          %v684 = vadd.f32 %v648, %v653
          %v685 = vadd.f32 %v649, %v653
          %v686 = vadd.f32 %v650, %v653
          %v687 = vmax.f32 %v655, 0.0
          %v688 = vmax.f32 %v656, 0.0
          %v689 = vmax.f32 %v657, 0.0
          %v690 = vmax.f32 %v658, 0.0
          %v691 = vmax.f32 %v659, 0.0
          %v692 = vmax.f32 %v660, 0.0
          %v693 = vmax.f32 %v661, 0.0
          %v694 = vmax.f32 %v662, 0.0
          %v695 = vmax.f32 %v663, 0.0
          %v696 = vmax.f32 %v664, 0.0
          %v697 = vmax.f32 %v665, 0.0
          %v698 = vmax.f32 %v666, 0.0
          %v699 = vmax.f32 %v667, 0.0
          %v700 = vmax.f32 %v668, 0.0
          %v701 = vmax.f32 %v669, 0.0
          %v702 = vmax.f32 %v670, 0.0
          %v703 = vmax.f32 %v671, 0.0
          %v704 = vmax.f32 %v672, 0.0
          %v705 = vmax.f32 %v673, 0.0
          %v706 = vmax.f32 %v674, 0.0
          %v707 = vmax.f32 %v675, 0.0
          %v708 = vmax.f32 %v676, 0.0
          %v709 = vmax.f32 %v677, 0.0
          %v710 = vmax.f32 %v678, 0.0
          %v711 = vmax.f32 %v679, 0.0
          %v712 = vmax.f32 %v680, 0.0
          %v713 = vmax.f32 %v681, 0.0
          %v714 = vmax.f32 %v682, 0.0
          %v715 = vmax.f32 %v683, 0.0
          %v716 = vmax.f32 %v684, 0.0
          %v717 = vmax.f32 %v685, 0.0
          %v718 = vmax.f32 %v686, 0.0
          %v719 = vld [vmem:[#allocation8] sm:$0xff]
          %v720 = vld [vmem:[#allocation8 + $0x8] sm:$0xff]
          %v721 = vld [vmem:[#allocation8 + $0x10] sm:$0xff]
          %v722 = vld [vmem:[#allocation8 + $0x18] sm:$0xff]
          %v723 = vld [vmem:[#allocation8 + $0x20] sm:$0xff]
          %v724 = vld [vmem:[#allocation8 + $0x28] sm:$0xff]
          %v725 = vld [vmem:[#allocation8 + $0x30] sm:$0xff]
          %v726 = vld [vmem:[#allocation8 + $0x38] sm:$0xff]
          %v727 = vld [vmem:[#allocation8 + $0x40] sm:$0xff]
          %v728 = vld [vmem:[#allocation8 + $0x48] sm:$0xff]
          %v729 = vld [vmem:[#allocation8 + $0x50] sm:$0xff]
          %v730 = vld [vmem:[#allocation8 + $0x58] sm:$0xff]
          %v731 = vld [vmem:[#allocation8 + $0x60] sm:$0xff]
          %v732 = vld [vmem:[#allocation8 + $0x68] sm:$0xff]
          %v733 = vld [vmem:[#allocation8 + $0x70] sm:$0xff]
          %v734 = vld [vmem:[#allocation8 + $0x78] sm:$0xff]
          %v735 = vld [vmem:[%s4] sm:$0x1]
          %v737 = vperm.slane %v735, 0
          %739 = vmatpush.msra.mxu0 %v734
          %740 = vmatpush.msra.mxu0 %v733
          %741 = vmatpush.msra.mxu0 %v732
          %742 = vmatpush.msra.mxu0 %v731
          %743 = vmatpush.msra.mxu0 %v730
          %744 = vmatpush.msra.mxu0 %v729
          %745 = vmatpush.msra.mxu0 %v728
          %746 = vmatpush.msra.mxu0 %v727
          %747 = vmatpush.msra.mxu0 %v726
          %748 = vmatpush.msra.mxu0 %v725
          %749 = vmatpush.msra.mxu0 %v724
          %750 = vmatpush.msra.mxu0 %v723
          %751 = vmatpush.msra.mxu0 %v722
          %752 = vmatpush.msra.mxu0 %v721
          %753 = vmatpush.msra.mxu0 %v720
          %754 = vmatpush.msra.mxu0 %v719
          %755 = vmatmul.f32.gmra.mxu0 %v687
          %v756 = vpop.f32.mrf.mxu0
          %v757 = vadd.f32 %v737, %v756
          %758 = vmatmul.f32.gmra.mxu0 %v688
          %v759 = vpop.f32.mrf.mxu0
          %v760 = vadd.f32 %v737, %v759
          %761 = vmatmul.f32.gmra.mxu0 %v689
          %v762 = vpop.f32.mrf.mxu0
          %v763 = vadd.f32 %v737, %v762
          %764 = vmatmul.f32.gmra.mxu0 %v690
          %v765 = vpop.f32.mrf.mxu0
          %v766 = vadd.f32 %v737, %v765
          %767 = vmatmul.f32.gmra.mxu0 %v691
          %v768 = vpop.f32.mrf.mxu0
          %v769 = vadd.f32 %v737, %v768
          %770 = vmatmul.f32.gmra.mxu0 %v692
          %v771 = vpop.f32.mrf.mxu0
          %v772 = vadd.f32 %v737, %v771
          %773 = vmatmul.f32.gmra.mxu0 %v693
          %v774 = vpop.f32.mrf.mxu0
          %v775 = vadd.f32 %v737, %v774
          %776 = vmatmul.f32.gmra.mxu0 %v694
          %v777 = vpop.f32.mrf.mxu0
          %v778 = vadd.f32 %v737, %v777
          %779 = vmatmul.f32.gmra.mxu0 %v695
          %v780 = vpop.f32.mrf.mxu0
          %v781 = vadd.f32 %v737, %v780
          %782 = vmatmul.f32.gmra.mxu0 %v696
          %v783 = vpop.f32.mrf.mxu0
          %v784 = vadd.f32 %v737, %v783
          %785 = vmatmul.f32.gmra.mxu0 %v697
          %v786 = vpop.f32.mrf.mxu0
          %v787 = vadd.f32 %v737, %v786
          %788 = vmatmul.f32.gmra.mxu0 %v698
          %v789 = vpop.f32.mrf.mxu0
          %v790 = vadd.f32 %v737, %v789
          %791 = vmatmul.f32.gmra.mxu0 %v699
          %v792 = vpop.f32.mrf.mxu0
          %v793 = vadd.f32 %v737, %v792
          %794 = vmatmul.f32.gmra.mxu0 %v700
          %v795 = vpop.f32.mrf.mxu0
          %v796 = vadd.f32 %v737, %v795
          %797 = vmatmul.f32.gmra.mxu0 %v701
          %v798 = vpop.f32.mrf.mxu0
          %v799 = vadd.f32 %v737, %v798
          %800 = vmatmul.f32.gmra.mxu0 %v702
          %v801 = vpop.f32.mrf.mxu0
          %v802 = vadd.f32 %v737, %v801
          %803 = vmatmul.f32.gmra.mxu0 %v703
          %v804 = vpop.f32.mrf.mxu0
          %v805 = vadd.f32 %v737, %v804
          %806 = vmatmul.f32.gmra.mxu0 %v704
          %v807 = vpop.f32.mrf.mxu0
          %v808 = vadd.f32 %v737, %v807
          %809 = vmatmul.f32.gmra.mxu0 %v705
          %v810 = vpop.f32.mrf.mxu0
          %v811 = vadd.f32 %v737, %v810
          %812 = vmatmul.f32.gmra.mxu0 %v706
          %v813 = vpop.f32.mrf.mxu0
          %v814 = vadd.f32 %v737, %v813
          %815 = vmatmul.f32.gmra.mxu0 %v707
          %v816 = vpop.f32.mrf.mxu0
          %v817 = vadd.f32 %v737, %v816
          %818 = vmatmul.f32.gmra.mxu0 %v708
          %v819 = vpop.f32.mrf.mxu0
          %v820 = vadd.f32 %v737, %v819
          %821 = vmatmul.f32.gmra.mxu0 %v709
          %v822 = vpop.f32.mrf.mxu0
          %v823 = vadd.f32 %v737, %v822
          %824 = vmatmul.f32.gmra.mxu0 %v710
          %v825 = vpop.f32.mrf.mxu0
          %v826 = vadd.f32 %v737, %v825
          %827 = vmatmul.f32.gmra.mxu0 %v711
          %v828 = vpop.f32.mrf.mxu0
          %v829 = vadd.f32 %v737, %v828
          %830 = vmatmul.f32.gmra.mxu0 %v712
          %v831 = vpop.f32.mrf.mxu0
          %v832 = vadd.f32 %v737, %v831
          %833 = vmatmul.f32.gmra.mxu0 %v713
          %v834 = vpop.f32.mrf.mxu0
          %v835 = vadd.f32 %v737, %v834
          %836 = vmatmul.f32.gmra.mxu0 %v714
          %v837 = vpop.f32.mrf.mxu0
          %v838 = vadd.f32 %v737, %v837
          %839 = vmatmul.f32.gmra.mxu0 %v715
          %v840 = vpop.f32.mrf.mxu0
          %v841 = vadd.f32 %v737, %v840
          %842 = vmatmul.f32.gmra.mxu0 %v716
          %v843 = vpop.f32.mrf.mxu0
          %v844 = vadd.f32 %v737, %v843
          %845 = vmatmul.f32.gmra.mxu0 %v717
          %v846 = vpop.f32.mrf.mxu0
          %v847 = vadd.f32 %v737, %v846
          %848 = vmatmul.f32.gmra.mxu0 %v718
          %v849 = vpop.f32.mrf.mxu0
          %v850 = vadd.f32 %v737, %v849
          %851 = vdwg.mxu0
          %v852 = vsub.f32 0.0, %v757
          %v853 = vsub.f32 0.0, %v760
          %v854 = vsub.f32 0.0, %v763
          %v855 = vsub.f32 0.0, %v766
          %v856 = vsub.f32 0.0, %v769
          %v857 = vsub.f32 0.0, %v772
          %v858 = vsub.f32 0.0, %v775
          %v859 = vsub.f32 0.0, %v778
          %v860 = vsub.f32 0.0, %v781
          %v861 = vsub.f32 0.0, %v784
          %v862 = vsub.f32 0.0, %v787
          %v863 = vsub.f32 0.0, %v790
          %v864 = vsub.f32 0.0, %v793
          %v865 = vsub.f32 0.0, %v796
          %v866 = vsub.f32 0.0, %v799
          %v867 = vsub.f32 0.0, %v802
          %v868 = vsub.f32 0.0, %v805
          %v869 = vsub.f32 0.0, %v808
          %v870 = vsub.f32 0.0, %v811
          %v871 = vsub.f32 0.0, %v814
          %v872 = vsub.f32 0.0, %v817
          %v873 = vsub.f32 0.0, %v820
          %v874 = vsub.f32 0.0, %v823
          %v875 = vsub.f32 0.0, %v826
          %v876 = vsub.f32 0.0, %v829
          %v877 = vsub.f32 0.0, %v832
          %v878 = vsub.f32 0.0, %v835
          %v879 = vsub.f32 0.0, %v838
          %v880 = vsub.f32 0.0, %v841
          %v881 = vsub.f32 0.0, %v844
          %v882 = vsub.f32 0.0, %v847
          %v883 = vsub.f32 0.0, %v850
          %v884 = vmul.f32 %v852, 1.442695
          %v885 = vpow.pop %v884
          %v886 = vmul.f32 %v853, 1.442695
          %v887 = vpow.pop %v886
          %v888 = vmul.f32 %v854, 1.442695
          %v889 = vpow.pop %v888
          %v890 = vmul.f32 %v855, 1.442695
          %v891 = vpow.pop %v890
          %v892 = vmul.f32 %v856, 1.442695
          %v893 = vpow.pop %v892
          %v894 = vmul.f32 %v857, 1.442695
          %v895 = vpow.pop %v894
          %v896 = vmul.f32 %v858, 1.442695
          %v897 = vpow.pop %v896
          %v898 = vmul.f32 %v859, 1.442695
          %v899 = vpow.pop %v898
          %v900 = vmul.f32 %v860, 1.442695
          %v901 = vpow.pop %v900
          %v902 = vmul.f32 %v861, 1.442695
          %v903 = vpow.pop %v902
          %v904 = vmul.f32 %v862, 1.442695
          %v905 = vpow.pop %v904
          %v906 = vmul.f32 %v863, 1.442695
          %v907 = vpow.pop %v906
          %v908 = vmul.f32 %v864, 1.442695
          %v909 = vpow.pop %v908
          %v910 = vmul.f32 %v865, 1.442695
          %v911 = vpow.pop %v910
          %v912 = vmul.f32 %v866, 1.442695
          %v913 = vpow.pop %v912
          %v914 = vmul.f32 %v867, 1.442695
          %v915 = vpow.pop %v914
          %v916 = vmul.f32 %v868, 1.442695
          %v917 = vpow.pop %v916
          %v918 = vmul.f32 %v869, 1.442695
          %v919 = vpow.pop %v918
          %v920 = vmul.f32 %v870, 1.442695
          %v921 = vpow.pop %v920
          %v922 = vmul.f32 %v871, 1.442695
          %v923 = vpow.pop %v922
          %v924 = vmul.f32 %v872, 1.442695
          %v925 = vpow.pop %v924
          %v926 = vmul.f32 %v873, 1.442695
          %v927 = vpow.pop %v926
          %v928 = vmul.f32 %v874, 1.442695
          %v929 = vpow.pop %v928
          %v930 = vmul.f32 %v875, 1.442695
          %v931 = vpow.pop %v930
          %v932 = vmul.f32 %v876, 1.442695
          %v933 = vpow.pop %v932
          %v934 = vmul.f32 %v877, 1.442695
          %v935 = vpow.pop %v934
          %v936 = vmul.f32 %v878, 1.442695
          %v937 = vpow.pop %v936
          %v938 = vmul.f32 %v879, 1.442695
          %v939 = vpow.pop %v938
          %v940 = vmul.f32 %v880, 1.442695
          %v941 = vpow.pop %v940
          %v942 = vmul.f32 %v881, 1.442695
          %v943 = vpow.pop %v942
          %v944 = vmul.f32 %v882, 1.442695
          %v945 = vpow.pop %v944
          %v946 = vmul.f32 %v883, 1.442695
          %v947 = vpow.pop %v946
          %v948 = vadd.f32 %v885, 1.0
          %v949 = vadd.f32 %v887, 1.0
          %v950 = vadd.f32 %v889, 1.0
          %v951 = vadd.f32 %v891, 1.0
          %v952 = vadd.f32 %v893, 1.0
          %v953 = vadd.f32 %v895, 1.0
          %v954 = vadd.f32 %v897, 1.0
          %v955 = vadd.f32 %v899, 1.0
          %v956 = vadd.f32 %v901, 1.0
          %v957 = vadd.f32 %v903, 1.0
          %v958 = vadd.f32 %v905, 1.0
          %v959 = vadd.f32 %v907, 1.0
          %v960 = vadd.f32 %v909, 1.0
          %v961 = vadd.f32 %v911, 1.0
          %v962 = vadd.f32 %v913, 1.0
          %v963 = vadd.f32 %v915, 1.0
          %v964 = vadd.f32 %v917, 1.0
          %v965 = vadd.f32 %v919, 1.0
          %v966 = vadd.f32 %v921, 1.0
          %v967 = vadd.f32 %v923, 1.0
          %v968 = vadd.f32 %v925, 1.0
          %v969 = vadd.f32 %v927, 1.0
          %v970 = vadd.f32 %v929, 1.0
          %v971 = vadd.f32 %v931, 1.0
          %v972 = vadd.f32 %v933, 1.0
          %v973 = vadd.f32 %v935, 1.0
          %v974 = vadd.f32 %v937, 1.0
          %v975 = vadd.f32 %v939, 1.0
          %v976 = vadd.f32 %v941, 1.0
          %v977 = vadd.f32 %v943, 1.0
          %v978 = vadd.f32 %v945, 1.0
          %v979 = vadd.f32 %v947, 1.0
          %v980 = vrcp.pop %v948
          %v981 = vrcp.pop %v949
          %v982 = vrcp.pop %v950
          %v983 = vrcp.pop %v951
          %v984 = vrcp.pop %v952
          %v985 = vrcp.pop %v953
          %v986 = vrcp.pop %v954
          %v987 = vrcp.pop %v955
          %v988 = vrcp.pop %v956
          %v989 = vrcp.pop %v957
          %v990 = vrcp.pop %v958
          %v991 = vrcp.pop %v959
          %v992 = vrcp.pop %v960
          %v993 = vrcp.pop %v961
          %v994 = vrcp.pop %v962
          %v995 = vrcp.pop %v963
          %v996 = vrcp.pop %v964
          %v997 = vrcp.pop %v965
          %v998 = vrcp.pop %v966
          %v999 = vrcp.pop %v967
          %v1000 = vrcp.pop %v968
          %v1001 = vrcp.pop %v969
          %v1002 = vrcp.pop %v970
          %v1003 = vrcp.pop %v971
          %v1004 = vrcp.pop %v972
          %v1005 = vrcp.pop %v973
          %v1006 = vrcp.pop %v974
          %v1007 = vrcp.pop %v975
          %v1008 = vrcp.pop %v976
          %v1009 = vrcp.pop %v977
          %v1010 = vrcp.pop %v978
          %v1011 = vrcp.pop %v979
          %1012 = vst [vmem:[%s318] sm:$0xff] %v980
          %1013 = vst [vmem:[%s318 + $0x8] sm:$0xff] %v981
          %1014 = vst [vmem:[%s318 + $0x10] sm:$0xff] %v982
          %1015 = vst [vmem:[%s318 + $0x18] sm:$0xff] %v983
          %1016 = vst [vmem:[%s318 + $0x20] sm:$0xff] %v984
          %1017 = vst [vmem:[%s318 + $0x28] sm:$0xff] %v985
          %1018 = vst [vmem:[%s318 + $0x30] sm:$0xff] %v986
          %1019 = vst [vmem:[%s318 + $0x38] sm:$0xff] %v987
          %1020 = vst [vmem:[%s318 + $0x40] sm:$0xff] %v988
          %1021 = vst [vmem:[%s318 + $0x48] sm:$0xff] %v989
          %1022 = vst [vmem:[%s318 + $0x50] sm:$0xff] %v990
          %1023 = vst [vmem:[%s318 + $0x58] sm:$0xff] %v991
          %1024 = vst [vmem:[%s318 + $0x60] sm:$0xff] %v992
          %1025 = vst [vmem:[%s318 + $0x68] sm:$0xff] %v993
          %1026 = vst [vmem:[%s318 + $0x70] sm:$0xff] %v994
          %1027 = vst [vmem:[%s318 + $0x78] sm:$0xff] %v995
          %1028 = vst [vmem:[%s318 + $0x80] sm:$0xff] %v996
          %1029 = vst [vmem:[%s318 + $0x88] sm:$0xff] %v997
          %1030 = vst [vmem:[%s318 + $0x90] sm:$0xff] %v998
          %1031 = vst [vmem:[%s318 + $0x98] sm:$0xff] %v999
          %1032 = vst [vmem:[%s318 + $0xa0] sm:$0xff] %v1000
          %1033 = vst [vmem:[%s318 + $0xa8] sm:$0xff] %v1001
          %1034 = vst [vmem:[%s318 + $0xb0] sm:$0xff] %v1002
          %1035 = vst [vmem:[%s318 + $0xb8] sm:$0xff] %v1003
          %1036 = vst [vmem:[%s318 + $0xc0] sm:$0xff] %v1004
          %1037 = vst [vmem:[%s318 + $0xc8] sm:$0xff] %v1005
          %1038 = vst [vmem:[%s318 + $0xd0] sm:$0xff] %v1006
          %1039 = vst [vmem:[%s318 + $0xd8] sm:$0xff] %v1007
          %1040 = vst [vmem:[%s318 + $0xe0] sm:$0xff] %v1008
          %1041 = vst [vmem:[%s318 + $0xe8] sm:$0xff] %v1009
          %1042 = vst [vmem:[%s318 + $0xf0] sm:$0xff] %v1010
          %1043 = vst [vmem:[%s318 + $0xf8] sm:$0xff] %v1011
        $region60: #{tpu_custom_call.1} parent=39 // pred_fallthru
          _
        %s1044 = sand.u32 %s162, 1
        %s1045 = scalar_lea.sflag [#allocation5], %s1044
        %s1046 = sand.u32 %s162, 1
        %s1047 = smul.addr %s1046, 256
        %s1048 = scalar_lea.vmem [#allocation9], %s1047
        // Predicated region
        $region61: #{tpu_custom_call.1} parent=39 // pred_check
          %p1049 = pneg %p172
        $region62: #{tpu_custom_call.1} parent=39 // pred_check_branch
          %1051 = sbr.rel (%p1049) target = $region64
        $region63: #{tpu_custom_call.1} parent=39 // pred_region
          %s1052 = smul.u32 32, %s29
          %1054 = vsyncadd %s1045, 0
          %s1055 = smul.addr %s1052, 8
          %s1056 = scalar_lea.hbm %s5, %s1055
          %s1057 = sshll.u32 %s1048, 4
          %s1058 = int_to_ptr.vmem [resolvable:$true] %s1057
          %s1059 = sshll.u32 %s1056, 4
          %s1060 = int_to_ptr.hbm [resolvable:$true] %s1059
          %1065 = dma.vmem_to_hbm [thread:$0]  %s1058, 4096, %s1060, %s1045, 128, 128, 8
        $region64: #{tpu_custom_call.1} parent=39 // pred_fallthru
          _
      $region40: #{tpu_custom_call.1} parent=5 // pred_fallthru
        _
      %p1066 = scmp.le.s32.totalorder 2, %s20
      // Predicated region
      $region65: #{tpu_custom_call.1} parent=5 // pred_check
        %p1067 = pneg %p1066
      $region66: #{tpu_custom_call.1} parent=5 // pred_check_branch
        %1069 = sbr.rel (%p1067) target = $region68
      $region67: #{tpu_custom_call.1} parent=5 // pred_region
        %s1070 = ssub.s32 %s20, 2
        // Predicated region
        $region69: #{tpu_custom_call.1} parent=67 // pred_check
          %p1071 = pneg %p178
        $region70: #{tpu_custom_call.1} parent=67 // pred_check_branch
          %1073 = sbr.rel (%p1071) target = $region72
        $region71: #{tpu_custom_call.1} parent=67 // pred_region
          %s1074 = sand.u32 %s163, 1
          %s1075 = scalar_lea.sflag [#allocation5], %s1074
          %s1076 = sand.u32 %s163, 1
          %s1077 = smul.addr %s1076, 256
          %s1078 = scalar_lea.vmem [#allocation9], %s1077
          %1080 = dma.done %s1075, 4096
        $region72: #{tpu_custom_call.1} parent=67 // pred_fallthru
          _
      $region68: #{tpu_custom_call.1} parent=5 // pred_fallthru
        _
    $region6: #{tpu_custom_call.1} parent=1 // loop_footer
      %s24 = sadd.s32 1, %s20
    $region7: #{tpu_custom_call.1} parent=1 // loop_footer_branch
      %19 = sbr.rel target = $region3
    $region8: #{tpu_custom_call.1} parent=1 // loop_exit
      _
    %1081 = vsyncpa [#allocation4], 1
    %s1082 = scalar_lea.sflag [#allocation4], 1
    %1083 = vsyncpa %s1082, 1
    %1084 = vsyncpa [#allocation7], 1
    %s1085 = scalar_lea.sflag [#allocation7], 1
    %1086 = vsyncpa %s1085, 1
    %1087 = vsyncpa [#allocation5], 1
    %s1088 = scalar_lea.sflag [#allocation5], 1
    %1089 = vsyncpa %s1088, 1

</llo_original>
